<compile_context>
chip_gen: v6e
topology: v6e:2x2x1
jax: 0.10.0
libtpu: 0.0.40
codegen_flags: <defaults>
</compile_context>

<pallas_src>
import functools
from math import sqrt

import jax
import jax.numpy as jnp
from jax.experimental import pallas as pl
from jax.experimental.pallas import tpu as pltpu


NONLIN_FNS = {
    "relu": lambda x: jnp.maximum(x, 0.0),
    "tanh": jnp.tanh,
    "sigmoid": jax.nn.sigmoid,
    "id": lambda x: x,
}


def _round_up(x, m):
    return ((x + m - 1) // m) * m


def _mlp_kernel(nonlin, output_nonlin, n_layers, matmul_dtype,
                x_ref, w_ref, b_ref, out_ref):
    """Fused MLP forward on one batch tile.

    x_ref:   (TB, 1)            f32   batch tile of the scalar input
    w_ref:   (n_layers, PW, PW) f32   layer i holds W_i.T, zero-padded
    b_ref:   (n_layers, 1, PW)  f32   zero-padded biases
    out_ref: (TB, PW)                 lane-dense padded output tile
    """
    act = NONLIN_FNS[nonlin]
    out_act = NONLIN_FNS[output_nonlin]

    x = x_ref[...].astype(jnp.float32)                      # (TB, 1)

    # ---- layer 0: in_dim == 1 -> rank-1 update on the VPU, skip the MXU entirely. ----
    w0_row = w_ref[0][0:1, :]                                # (1, PW)  (only row 0 is nonzero)
    b0 = b_ref[0]                                            # (1, PW)
    h = x * w0_row + b0                                      # broadcast -> (TB, PW), f32
    if n_layers > 1:
        h = act(h)

    # ---- remaining layers on the MXU, f32 accumulation. ----
    for i in range(1, n_layers):
        wi = w_ref[i]                                        # (PW, PW)
        bi = b_ref[i]                                        # (1, PW)
        if matmul_dtype is not None:
            lhs = h.astype(matmul_dtype)                     # bf16 MXU inputs on v6e/v7x
            rhs = wi.astype(matmul_dtype)
        else:
            lhs, rhs = h, wi                                 # full f32 matmul
        h = jnp.dot(lhs, rhs, preferred_element_type=jnp.float32) + bi
        if i != n_layers - 1:
            h = act(h)                                       # elementwise stays f32 (v5e-safe)

    h = out_act(h)
    out_ref[...] = h.astype(out_ref.dtype)


def mlp_hyper_forward(x, weights, biases, nonlin="relu", output_nonlin="tanh",
                      block_b=512, matmul_dtype=None):
    """x: (B, 1). weights[i]: (out_i, in_i) PyTorch convention. biases[i]: (out_i,).

    matmul_dtype: None -> f32 matmul operands (bit-faithful to the f32 module at these widths);
    pass jnp.bfloat16 on v6e/v7x for full-rate MXU if widths/batch grow.
    """
    n_layers = len(weights)
    B, in_dim = x.shape
    assert in_dim == 1, "MLP_Hyper_old takes a scalar (B, 1) input"
    dims = [1] + [int(w.shape[0]) for w in weights]          # [1, l0, ..., data_dim**2]
    out_dim = dims[-1]

    # Shared lane-dense padded width (>= widest layer, multiple of 128).
    PW = _round_up(max(dims[1:]), 128)

    # Pack weights (transposed to (in, out)) and biases into two zero-padded arrays.
    w_packed = jnp.zeros((n_layers, PW, PW), jnp.float32)
    b_packed = jnp.zeros((n_layers, 1, PW), jnp.float32)
    for i, (w, b) in enumerate(zip(weights, biases)):
        w = jnp.asarray(w, jnp.float32)
        b = jnp.asarray(b, jnp.float32)
        w_packed = w_packed.at[i, :dims[i], :dims[i + 1]].set(w.T)
        b_packed = b_packed.at[i, 0, :dims[i + 1]].set(b)

    # Batch tile: multiple of 8 sublanes; >=256 fills MXU rows at realistic batch sizes.
    TB = min(_round_up(block_b, 8), _round_up(B, 8))
    B_pad = _round_up(B, TB)
    x_pad = jnp.zeros((B_pad, 1), x.dtype).at[:B, :].set(x)

    grid = (B_pad // TB,)

    # Advisory cost estimate so XLA does not serialize surrounding ops around the call.
    flops = 2 * B_pad * sum(dims[i] * dims[i + 1] for i in range(n_layers))
    transcendentals = sum(
        B_pad * dims[i + 1]
        for i in range(n_layers)
        if (nonlin if i != n_layers - 1 else output_nonlin) in ("tanh", "sigmoid"))
    bytes_accessed = 4 * (x_pad.size + w_packed.size + b_packed.size + B_pad * PW)

    out_padded = pl.pallas_call(
        functools.partial(_mlp_kernel, nonlin, output_nonlin, n_layers, matmul_dtype),
        out_shape=jax.ShapeDtypeStruct((B_pad, PW), x.dtype),
        grid=grid,
        in_specs=[
            pl.BlockSpec((TB, 1), lambda i: (i, 0)),                  # batch-tiled input
            pl.BlockSpec((n_layers, PW, PW), lambda i: (0, 0, 0)),    # weights: VMEM-resident
            pl.BlockSpec((n_layers, 1, PW), lambda i: (0, 0, 0)),     # biases:  VMEM-resident
        ],
        out_specs=pl.BlockSpec((TB, PW), lambda i: (i, 0)),           # lane-dense output
        compiler_params=pltpu.CompilerParams(
            dimension_semantics=("parallel",)),                       # megacore split on v7x
        cost_estimate=pl.CostEstimate(
            flops=flops,
            transcendentals=transcendentals,
            bytes_accessed=bytes_accessed),
    )(x_pad, w_packed, b_packed)

    return out_padded[:B, :out_dim]


def init_mlp_params(key, data_dim, layers):
    """Deterministic init matching nn.Linear default: U(-1/sqrt(in), 1/sqrt(in))."""
    dims = [1] + list(layers) + [data_dim ** 2]
    weights, biases = [], []
    for i in range(len(dims) - 1):
        fan_in, fan_out = dims[i], dims[i + 1]
        key, kw, kb = jax.random.split(key, 3)
        bound = 1.0 / sqrt(fan_in)
        weights.append(jax.random.uniform(kw, (fan_out, fan_in), jnp.float32,
                                          minval=-bound, maxval=bound))
        biases.append(jax.random.uniform(kb, (fan_out,), jnp.float32,
                                         minval=-bound, maxval=bound))
    return weights, biases


def reference_forward(x, weights, biases, nonlin, output_nonlin):
    """Plain-JAX reference, f32-accurate matmuls (HIGHEST precision)."""
    h = x
    n = len(weights)
    for i, (w, b) in enumerate(zip(weights, biases)):
        h = jnp.dot(h, w.T, precision=jax.lax.Precision.HIGHEST) + b
        if i != n - 1:
            h = NONLIN_FNS[nonlin](h)
    return NONLIN_FNS[output_nonlin](h)


if __name__ == "__main__":
    data_dim = 4           # output dim = data_dim**2 = 16
    layers = [32, 32]      # hidden layer widths
    nonlin = "relu"
    output_nonlin = "tanh"

    key = jax.random.PRNGKey(0)
    key, kx1, kx2 = jax.random.split(key, 3)
    weights, biases = init_mlp_params(key, data_dim, layers)

    # --- small batch (single grid step) ---
    x_small = jax.random.normal(kx1, (8, 1), jnp.float32)
    out_small = jax.block_until_ready(
        mlp_hyper_forward(x_small, weights, biases, nonlin, output_nonlin))
    ref_small = reference_forward(x_small, weights, biases, nonlin, output_nonlin)
    assert out_small.shape == (8, data_dim ** 2), out_small.shape
    assert jnp.allclose(out_small, ref_small, atol=1e-4, rtol=1e-4), "mismatch (small batch)"

    # --- larger batch exercising the batch grid (grid=3, padded batch) ---
    x_big = jax.random.normal(kx2, (600, 1), jnp.float32)
    out_big = jax.block_until_ready(
        mlp_hyper_forward(x_big, weights, biases, nonlin, output_nonlin, block_b=256))
    ref_big = reference_forward(x_big, weights, biases, nonlin, output_nonlin)
    assert out_big.shape == (600, data_dim ** 2), out_big.shape
    assert jnp.allclose(out_big, ref_big, atol=1e-4, rtol=1e-4), "mismatch (batch grid)"

    print("KERNEL_OK")
</pallas_src>

<mosaic_0001>
module attributes {stable_mosaic.version = 11 : i64} {
  func.func @_mlp_kernel(%arg0: i32, %arg1: memref<8x1xf32, #tpu.memory_space<vmem>>, %arg2: memref<3x128x128xf32, #tpu.memory_space<vmem>>, %arg3: memref<3x1x128xf32, #tpu.memory_space<vmem>>, %arg4: memref<8x128xf32, #tpu.memory_space<vmem>>) attributes {dimension_semantics = [#tpu.dimension_semantics<parallel>], iteration_bounds = array<i64: 1>, scalar_prefetch = 0 : i64, scratch_operands = 0 : i64, tpu.core_type = #tpu.core_type<tc>, window_params = [{transform_indices = @transform_0, window_bounds = array<i64: 8, 1>}, {pipeline_mode = #tpu.pipeline_mode<synchronous>, transform_indices = @transform_1, window_bounds = array<i64: 3, 128, 128>}, {pipeline_mode = #tpu.pipeline_mode<synchronous>, transform_indices = @transform_2, window_bounds = array<i64: 3, 1, 128>}, {transform_indices = @transform_3, window_bounds = array<i64: 8, 128>}]} {
    %c0 = arith.constant 0 : index
    %c0_0 = arith.constant 0 : index
    %0 = vector.load %arg1[%c0, %c0_0] : memref<8x1xf32, #tpu.memory_space<vmem>>, vector<8x1xf32>
    %c0_1 = arith.constant 0 : index
    %c0_2 = arith.constant 0 : index
    %c0_3 = arith.constant 0 : index
    %1 = vector.load %arg2[%c0_1, %c0_2, %c0_3] : memref<3x128x128xf32, #tpu.memory_space<vmem>>, vector<1x128x128xf32>
    %2 = vector.shape_cast %1 : vector<1x128x128xf32> to vector<128x128xf32>
    %3 = vector.extract_strided_slice %2 {offsets = [0, 0], sizes = [1, 128], strides = [1, 1]} : vector<128x128xf32> to vector<1x128xf32>
    %c0_4 = arith.constant 0 : index
    %c0_5 = arith.constant 0 : index
    %c0_6 = arith.constant 0 : index
    %4 = vector.load %arg3[%c0_4, %c0_5, %c0_6] : memref<3x1x128xf32, #tpu.memory_space<vmem>>, vector<1x1x128xf32>
    %5 = vector.shape_cast %4 : vector<1x1x128xf32> to vector<1x128xf32>
    %6 = vector.broadcast %0 : vector<8x1xf32> to vector<8x128xf32>
    %7 = vector.broadcast %3 : vector<1x128xf32> to vector<8x128xf32>
    %8 = arith.mulf %6, %7 : vector<8x128xf32>
    %9 = vector.broadcast %5 : vector<1x128xf32> to vector<8x128xf32>
    %10 = arith.addf %8, %9 : vector<8x128xf32>
    %cst = arith.constant 0.000000e+00 : f32
    %11 = vector.broadcast %cst : f32 to vector<8x128xf32>
    %12 = arith.maximumf %10, %11 : vector<8x128xf32>
    %c1 = arith.constant 1 : index
    %c0_7 = arith.constant 0 : index
    %c0_8 = arith.constant 0 : index
    %13 = vector.load %arg2[%c1, %c0_7, %c0_8] : memref<3x128x128xf32, #tpu.memory_space<vmem>>, vector<1x128x128xf32>
    %14 = vector.shape_cast %13 : vector<1x128x128xf32> to vector<128x128xf32>
    %c1_9 = arith.constant 1 : index
    %c0_10 = arith.constant 0 : index
    %c0_11 = arith.constant 0 : index
    %15 = vector.load %arg3[%c1_9, %c0_10, %c0_11] : memref<3x1x128xf32, #tpu.memory_space<vmem>>, vector<1x1x128xf32>
    %16 = vector.shape_cast %15 : vector<1x1x128xf32> to vector<1x128xf32>
    %cst_12 = arith.constant dense<0.000000e+00> : vector<8x128xf32>
    %17 = tpu.matmul %12, %14, %cst_12 {dimension_numbers = #tpu.dot_dimension_numbers<[1], [0], [0], [1], [0, 0, 1, 1], [], []>} : vector<8x128xf32>, vector<128x128xf32>, vector<8x128xf32> -> vector<8x128xf32>
    %18 = vector.broadcast %16 : vector<1x128xf32> to vector<8x128xf32>
    %19 = arith.addf %17, %18 : vector<8x128xf32>
    %cst_13 = arith.constant 0.000000e+00 : f32
    %20 = vector.broadcast %cst_13 : f32 to vector<8x128xf32>
    %21 = arith.maximumf %19, %20 : vector<8x128xf32>
    %c2 = arith.constant 2 : index
    %c0_14 = arith.constant 0 : index
    %c0_15 = arith.constant 0 : index
    %22 = vector.load %arg2[%c2, %c0_14, %c0_15] : memref<3x128x128xf32, #tpu.memory_space<vmem>>, vector<1x128x128xf32>
    %23 = vector.shape_cast %22 : vector<1x128x128xf32> to vector<128x128xf32>
    %c2_16 = arith.constant 2 : index
    %c0_17 = arith.constant 0 : index
    %c0_18 = arith.constant 0 : index
    %24 = vector.load %arg3[%c2_16, %c0_17, %c0_18] : memref<3x1x128xf32, #tpu.memory_space<vmem>>, vector<1x1x128xf32>
    %25 = vector.shape_cast %24 : vector<1x1x128xf32> to vector<1x128xf32>
    %cst_19 = arith.constant dense<0.000000e+00> : vector<8x128xf32>
    %26 = tpu.matmul %21, %23, %cst_19 {dimension_numbers = #tpu.dot_dimension_numbers<[1], [0], [0], [1], [0, 0, 1, 1], [], []>} : vector<8x128xf32>, vector<128x128xf32>, vector<8x128xf32> -> vector<8x128xf32>
    %27 = vector.broadcast %25 : vector<1x128xf32> to vector<8x128xf32>
    %28 = arith.addf %26, %27 : vector<8x128xf32>
    %29 = math.tanh %28 : vector<8x128xf32>
    %c0_20 = arith.constant 0 : index
    %c0_21 = arith.constant 0 : index
    %30 = vector.load %arg4[%c0_20, %c0_21] : memref<8x128xf32, #tpu.memory_space<vmem>>, vector<8x128xf32>
    tpu.vector_store %arg4[%c0_20, %c0_21], %29 {strides = array<i32>} : memref<8x128xf32, #tpu.memory_space<vmem>>, vector<8x128xf32>,
    return
  }
  func.func @transform_0(%arg0: i32) -> (i32, i32) {
    %c0_i32 = arith.constant 0 : i32
    %c0_i32_0 = arith.constant 0 : i32
    return %arg0, %c0_i32 : i32, i32
  }
  func.func @transform_1(%arg0: i32) -> (i32, i32, i32) {
    %c0_i32 = arith.constant 0 : i32
    %c0_i32_0 = arith.constant 0 : i32
    %c0_i32_1 = arith.constant 0 : i32
    %c0_i32_2 = arith.constant 0 : i32
    return %c0_i32, %c0_i32_0, %c0_i32_1 : i32, i32, i32
  }
  func.func @transform_2(%arg0: i32) -> (i32, i32, i32) {
    %c0_i32 = arith.constant 0 : i32
    %c0_i32_0 = arith.constant 0 : i32
    %c0_i32_1 = arith.constant 0 : i32
    %c0_i32_2 = arith.constant 0 : i32
    return %c0_i32, %c0_i32_0, %c0_i32_1 : i32, i32, i32
  }
  func.func @transform_3(%arg0: i32) -> (i32, i32) {
    %c0_i32 = arith.constant 0 : i32
    %c0_i32_0 = arith.constant 0 : i32
    return %arg0, %c0_i32 : i32, i32
  }
}

</mosaic_0001>

<llo_original>
// kernel: tpu_custom_call.1
$region0: #{tpu_custom_call.1}
  #allocation0 [shape = 'u32[]', space=smem, size = 0x4, offset = 0x4, fixed_abs, tag = 'smem constant byte address 0x4 - core index']
  #allocation1 [shape = 'u32[144,128]{1,0:T(1,128)}', space=vmem, size = 0x12000, scoped, tag = 'internal scratch']
  %s0 = inlined_call_operand.vmem [shape: f32[8,1], index: 0, kind: input, shape index: {}]
  %s1 = inlined_call_operand.hbm [shape: f32[3,128,128], index: 1, kind: input, shape index: {}]
  %s2 = inlined_call_operand.vmem [shape: f32[3,1,128], index: 2, kind: input, shape index: {}]
  %s3 = inlined_call_operand.hbm [shape: f32[8,128], index: 3, kind: output, shape index: {}]
  %s4 = sld [smem:[#allocation0]]
  $region26: #{tpu_custom_call.1} parent=0
    _
  %s6 = ssub.s32 1, %s4
  %s7 = scalar_select 0, %s6, %s4
  $region1: #{tpu_custom_call.1} parent=0
    #allocation2 [shape = 'u8[196608]{0}', space=vmem, size = 0x30000, scoped, tag = 'input window, operand 1, single buffered']
    #allocation3 [shape = 's32[1]{0}', space=sflag, size = 0x4, scoped, tag = 'scoped memory for tpu_custom_call.1']
    #allocation4 [shape = 's32[1]{0}', space=sflag, size = 0x4, scoped, tag = 'scoped memory for tpu_custom_call.1']
    #allocation5 [shape = 'u8[4096]{0}', space=vmem, size = 0x1000, scoped, tag = 'output window, operand 0, single buffered']
    %8 = vsyncpa [#allocation3], 0
    %9 = vsyncpa [#allocation4], 0
    // Predicated region
    $region2: #{tpu_custom_call.1} parent=1 // pred_check
      _
    $region3: #{tpu_custom_call.1} parent=1 // pred_check_branch
      %11 = sbr.rel (0) target = $region5
    $region4: #{tpu_custom_call.1} parent=1 // pred_region
      _
    $region5: #{tpu_custom_call.1} parent=1 // pred_fallthru
      _
    // Predicated region
    $region6: #{tpu_custom_call.1} parent=1 // pred_check
      _
    $region7: #{tpu_custom_call.1} parent=1 // pred_check_branch
      %13 = sbr.rel (0) target = $region9
    $region8: #{tpu_custom_call.1} parent=1 // pred_region
      %s15 = ssub.s32 6144, 6144
      %16 = vsyncadd [#allocation3], %s15
      %s17 = sshll.u32 [#allocation2], 4
      %s18 = int_to_ptr.vmem [resolvable:$true] %s17
      %23 = dma.hbm_to_vmem [thread:$0]  %s1, 6144, %s18, [#allocation3], 128, 128, 8
    $region9: #{tpu_custom_call.1} parent=1 // pred_fallthru
      _
    // Predicated region
    $region10: #{tpu_custom_call.1} parent=1 // pred_check
      _
    $region11: #{tpu_custom_call.1} parent=1 // pred_check_branch
      %25 = sbr.rel (0) target = $region13
    $region12: #{tpu_custom_call.1} parent=1 // pred_region
      _
    $region13: #{tpu_custom_call.1} parent=1 // pred_fallthru
      _
    // Predicated region
    $region14: #{tpu_custom_call.1} parent=1 // pred_check
      _
    $region15: #{tpu_custom_call.1} parent=1 // pred_check_branch
      %27 = sbr.rel (0) target = $region17
    $region16: #{tpu_custom_call.1} parent=1 // pred_region
      %28 = dma.done [#allocation3], 6144
    $region17: #{tpu_custom_call.1} parent=1 // pred_fallthru
      _
    %v29 = vld [vmem:[%s0] sm:$0xff]
    %v30 = vld [vmem:[#allocation2] sm:$0xff]
    %v31 = vld [vmem:[%s2] sm:$0x1]
    %33 = vset.pattern.permute.xlu0 0
    %34 = vperm.xlu0 %33, %v29
    %v35 = vpop.permute.xlu0 %34
    %v37 = vlaneseq
    %v38 = vshrl.u32 %v37, 7
    %v39 = vsub.s32 0, %v38
    %v40 = vrot.slane %v30, %v39
    %v41 = vmul.f32 %v35, %v40
    %v43 = vlaneseq
    %v44 = vshrl.u32 %v43, 7
    %v45 = vsub.s32 0, %v44
    %v46 = vrot.slane %v31, %v45
    %v48 = vadd.f32 %v41, %v46
    %v49 = vmax.f32 %v48, 0.0
    %s50 = scalar_lea.vmem [#allocation2], 128
    %v51 = vld [vmem:[%s50] sm:$0xff]
    %v52 = vld [vmem:[%s50 + $0x8] sm:$0xff]
    %v53 = vld [vmem:[%s50 + $0x10] sm:$0xff]
    %v54 = vld [vmem:[%s50 + $0x18] sm:$0xff]
    %v55 = vld [vmem:[%s50 + $0x20] sm:$0xff]
    %v56 = vld [vmem:[%s50 + $0x28] sm:$0xff]
    %v57 = vld [vmem:[%s50 + $0x30] sm:$0xff]
    %v58 = vld [vmem:[%s50 + $0x38] sm:$0xff]
    %v59 = vld [vmem:[%s50 + $0x40] sm:$0xff]
    %v60 = vld [vmem:[%s50 + $0x48] sm:$0xff]
    %v61 = vld [vmem:[%s50 + $0x50] sm:$0xff]
    %v62 = vld [vmem:[%s50 + $0x58] sm:$0xff]
    %v63 = vld [vmem:[%s50 + $0x60] sm:$0xff]
    %v64 = vld [vmem:[%s50 + $0x68] sm:$0xff]
    %v65 = vld [vmem:[%s50 + $0x70] sm:$0xff]
    %v66 = vld [vmem:[%s50 + $0x78] sm:$0xff]
    %s67 = scalar_lea.vmem %s2, 1
    %v68 = vld [vmem:[%s67] sm:$0x1]
    %v70 = vlaneseq
    %v71 = vshrl.u32 %v70, 7
    %v72 = vsub.s32 0, %v71
    %v73 = vrot.slane %v68, %v72
    %75 = vmatprep.subr.mxu0 0.0
    %76 = vmatpush1.msra.mxu0 %v66
    %77 = vmatprep.subr.mxu0 0.0
    %78 = vmatpush1.msra.mxu0 %v65
    %79 = vmatprep.subr.mxu0 0.0
    %80 = vmatpush1.msra.mxu0 %v64
    %81 = vmatprep.subr.mxu0 0.0
    %82 = vmatpush1.msra.mxu0 %v63
    %83 = vmatprep.subr.mxu0 0.0
    %84 = vmatpush1.msra.mxu0 %v62
    %85 = vmatprep.subr.mxu0 0.0
    %86 = vmatpush1.msra.mxu0 %v61
    %87 = vmatprep.subr.mxu0 0.0
    %88 = vmatpush1.msra.mxu0 %v60
    %89 = vmatprep.subr.mxu0 0.0
    %90 = vmatpush1.msra.mxu0 %v59
    %91 = vmatprep.subr.mxu0 0.0
    %92 = vmatpush1.msra.mxu0 %v58
    %93 = vmatprep.subr.mxu0 0.0
    %94 = vmatpush1.msra.mxu0 %v57
    %95 = vmatprep.subr.mxu0 0.0
    %96 = vmatpush1.msra.mxu0 %v56
    %97 = vmatprep.subr.mxu0 0.0
    %98 = vmatpush1.msra.mxu0 %v55
    %99 = vmatprep.subr.mxu0 0.0
    %100 = vmatpush1.msra.mxu0 %v54
    %101 = vmatprep.subr.mxu0 0.0
    %102 = vmatpush1.msra.mxu0 %v53
    %103 = vmatprep.subr.mxu0 0.0
    %104 = vmatpush1.msra.mxu0 %v52
    %105 = vmatprep.subr.mxu0 0.0
    %106 = vmatpush1.msra.mxu0 %v51
    %107 = vmatprep.subr.mxu0 0.0
    %108 = vmatpush2.msra.mxu0 0.0
    %109 = vmatprep.subr.mxu0 0.0
    %110 = vmatpush2.msra.mxu0 0.0
    %111 = vmatprep.subr.mxu0 0.0
    %112 = vmatpush2.msra.mxu0 0.0
    %113 = vmatprep.subr.mxu0 0.0
    %114 = vmatpush2.msra.mxu0 0.0
    %115 = vmatprep.subr.mxu0 0.0
    %116 = vmatpush2.msra.mxu0 0.0
    %117 = vmatprep.subr.mxu0 0.0
    %118 = vmatpush2.msra.mxu0 0.0
    %119 = vmatprep.subr.mxu0 0.0
    %120 = vmatpush2.msra.mxu0 0.0
    %121 = vmatprep.subr.mxu0 0.0
    %122 = vmatpush2.msra.mxu0 0.0
    %123 = vmatprep.subr.mxu0 0.0
    %124 = vmatpush2.msra.mxu0 0.0
    %125 = vmatprep.subr.mxu0 0.0
    %126 = vmatpush2.msra.mxu0 0.0
    %127 = vmatprep.subr.mxu0 0.0
    %128 = vmatpush2.msra.mxu0 0.0
    %129 = vmatprep.subr.mxu0 0.0
    %130 = vmatpush2.msra.mxu0 0.0
    %131 = vmatprep.subr.mxu0 0.0
    %132 = vmatpush2.msra.mxu0 0.0
    %133 = vmatprep.subr.mxu0 0.0
    %134 = vmatpush2.msra.mxu0 0.0
    %135 = vmatprep.subr.mxu0 0.0
    %136 = vmatpush2.msra.mxu0 0.0
    %137 = vmatprep.subr.mxu0 0.0
    %138 = vmatpush2.msra.mxu0 0.0
    %139 = vmatprep.mubr.f32.mxu0 0.0
    %140 = vmatmul.mubr.f32.gmra.mxu0 %v49
    %v141 = vpop.f32.mrf.mxu0
    %v142 = vadd.f32 %v73, %v141
    %v143 = vpop.f32.mrf.mxu0
    %144 = vdwg.mxu0
    %v145 = vmax.f32 %v142, 0.0
    %s146 = scalar_lea.vmem [#allocation2], 256
    %v147 = vld [vmem:[%s146] sm:$0xff]
    %v148 = vld [vmem:[%s146 + $0x8] sm:$0xff]
    %v149 = vld [vmem:[%s146 + $0x10] sm:$0xff]
    %v150 = vld [vmem:[%s146 + $0x18] sm:$0xff]
    %v151 = vld [vmem:[%s146 + $0x20] sm:$0xff]
    %v152 = vld [vmem:[%s146 + $0x28] sm:$0xff]
    %v153 = vld [vmem:[%s146 + $0x30] sm:$0xff]
    %v154 = vld [vmem:[%s146 + $0x38] sm:$0xff]
    %v155 = vld [vmem:[%s146 + $0x40] sm:$0xff]
    %v156 = vld [vmem:[%s146 + $0x48] sm:$0xff]
    %v157 = vld [vmem:[%s146 + $0x50] sm:$0xff]
    %v158 = vld [vmem:[%s146 + $0x58] sm:$0xff]
    %v159 = vld [vmem:[%s146 + $0x60] sm:$0xff]
    %v160 = vld [vmem:[%s146 + $0x68] sm:$0xff]
    %v161 = vld [vmem:[%s146 + $0x70] sm:$0xff]
    %v162 = vld [vmem:[%s146 + $0x78] sm:$0xff]
    %s163 = scalar_lea.vmem %s2, 2
    %v164 = vld [vmem:[%s163] sm:$0x1]
    %v166 = vlaneseq
    %v167 = vshrl.u32 %v166, 7
    %v168 = vsub.s32 0, %v167
    %v169 = vrot.slane %v164, %v168
    %171 = vmatprep.subr.mxu0 0.0
    %172 = vmatpush1.msra.mxu0 %v162
    %173 = vmatprep.subr.mxu0 0.0
    %174 = vmatpush1.msra.mxu0 %v161
    %175 = vmatprep.subr.mxu0 0.0
    %176 = vmatpush1.msra.mxu0 %v160
    %177 = vmatprep.subr.mxu0 0.0
    %178 = vmatpush1.msra.mxu0 %v159
    %179 = vmatprep.subr.mxu0 0.0
    %180 = vmatpush1.msra.mxu0 %v158
    %181 = vmatprep.subr.mxu0 0.0
    %182 = vmatpush1.msra.mxu0 %v157
    %183 = vmatprep.subr.mxu0 0.0
    %184 = vmatpush1.msra.mxu0 %v156
    %185 = vmatprep.subr.mxu0 0.0
    %186 = vmatpush1.msra.mxu0 %v155
    %187 = vmatprep.subr.mxu0 0.0
    %188 = vmatpush1.msra.mxu0 %v154
    %189 = vmatprep.subr.mxu0 0.0
    %190 = vmatpush1.msra.mxu0 %v153
    %191 = vmatprep.subr.mxu0 0.0
    %192 = vmatpush1.msra.mxu0 %v152
    %193 = vmatprep.subr.mxu0 0.0
    %194 = vmatpush1.msra.mxu0 %v151
    %195 = vmatprep.subr.mxu0 0.0
    %196 = vmatpush1.msra.mxu0 %v150
    %197 = vmatprep.subr.mxu0 0.0
    %198 = vmatpush1.msra.mxu0 %v149
    %199 = vmatprep.subr.mxu0 0.0
    %200 = vmatpush1.msra.mxu0 %v148
    %201 = vmatprep.subr.mxu0 0.0
    %202 = vmatpush1.msra.mxu0 %v147
    %203 = vmatprep.subr.mxu0 0.0
    %204 = vmatpush2.msra.mxu0 0.0
    %205 = vmatprep.subr.mxu0 0.0
    %206 = vmatpush2.msra.mxu0 0.0
    %207 = vmatprep.subr.mxu0 0.0
    %208 = vmatpush2.msra.mxu0 0.0
    %209 = vmatprep.subr.mxu0 0.0
    %210 = vmatpush2.msra.mxu0 0.0
    %211 = vmatprep.subr.mxu0 0.0
    %212 = vmatpush2.msra.mxu0 0.0
    %213 = vmatprep.subr.mxu0 0.0
    %214 = vmatpush2.msra.mxu0 0.0
    %215 = vmatprep.subr.mxu0 0.0
    %216 = vmatpush2.msra.mxu0 0.0
    %217 = vmatprep.subr.mxu0 0.0
    %218 = vmatpush2.msra.mxu0 0.0
    %219 = vmatprep.subr.mxu0 0.0
    %220 = vmatpush2.msra.mxu0 0.0
    %221 = vmatprep.subr.mxu0 0.0
    %222 = vmatpush2.msra.mxu0 0.0
    %223 = vmatprep.subr.mxu0 0.0
    %224 = vmatpush2.msra.mxu0 0.0
    %225 = vmatprep.subr.mxu0 0.0
    %226 = vmatpush2.msra.mxu0 0.0
    %227 = vmatprep.subr.mxu0 0.0
    %228 = vmatpush2.msra.mxu0 0.0
    %229 = vmatprep.subr.mxu0 0.0
    %230 = vmatpush2.msra.mxu0 0.0
    %231 = vmatprep.subr.mxu0 0.0
    %232 = vmatpush2.msra.mxu0 0.0
    %233 = vmatprep.subr.mxu0 0.0
    %234 = vmatpush2.msra.mxu0 0.0
    %235 = vmatprep.mubr.f32.mxu0 0.0
    %236 = vmatmul.mubr.f32.gmra.mxu0 %v145
    %v237 = vpop.f32.mrf.mxu0
    %v238 = vadd.f32 %v169, %v237
    %v239 = vpop.f32.mrf.mxu0
    %240 = vdwg.mxu0
    %v241 = vtanh.pop %v238
    %242 = vst [vmem:[#allocation5] sm:$0xff] %v241
    // Predicated region
    $region18: #{tpu_custom_call.1} parent=1 // pred_check
      _
    $region19: #{tpu_custom_call.1} parent=1 // pred_check_branch
      %244 = sbr.rel (0) target = $region21
    $region20: #{tpu_custom_call.1} parent=1 // pred_region
      %s246 = ssub.s32 128, 128
      %247 = vsyncadd [#allocation4], %s246
      %s249 = sshll.u32 [#allocation5], 4
      %s250 = int_to_ptr.vmem [resolvable:$true] %s249
      %252 = dma.vmem_to_hbm [thread:$0]  %s250, 128, %s3, [#allocation4]
    $region21: #{tpu_custom_call.1} parent=1 // pred_fallthru
      _
    // Predicated region
    $region22: #{tpu_custom_call.1} parent=1 // pred_check
      _
    $region23: #{tpu_custom_call.1} parent=1 // pred_check_branch
      %254 = sbr.rel (0) target = $region25
    $region24: #{tpu_custom_call.1} parent=1 // pred_region
      %255 = dma.done [#allocation4], 128
    $region25: #{tpu_custom_call.1} parent=1 // pred_fallthru
      _
    %256 = vsyncpa [#allocation3], 1
    %257 = vsyncpa [#allocation4], 1

</llo_original>
